<compile_context>
chip_gen: v7x
topology: tpu7x:2x2x1
jax: 0.10.0
libtpu: 0.0.40
codegen_flags: <defaults>
</compile_context>

<pallas_src>
import jax
import jax.numpy as jnp
from jax.experimental import pallas as pl
from jax.experimental.pallas import tpu as pltpu


def _implicit_m_kernel(x_ref, s_ref, o_ref):
    # x_ref: (TC, THW)   current (channel-tile, spatial-tile) slab
    # s_ref: (TC, 1)     per-channel scale (broadcast along lanes)
    # o_ref: (TC, THW)
    o_ref[...] = x_ref[...] * s_ref[...]


def implicit_m(x_nchw, implicit):
    """ImplicitM forward: out = implicit * x.

    x_nchw:   [B, C, H, W]
    implicit: [1, C, 1, 1] learned per-channel scale.
    Returns   [B, C, H, W].
    """
    B, C, H, W = x_nchw.shape
    HW = H * W

    # Free collapse of the trailing spatial dims (no data movement for NCHW).
    x = x_nchw.reshape(B, C, HW)
    scale = implicit.reshape(C, 1).astype(x.dtype)

    # Tile sizes: C on sublanes, HW on lanes.  Cap the x tile at 256 x 2048 f32
    # = 2 MiB so that double-buffered input + output tiles (~8 MiB total) fit
    # comfortably under v5e's 16 MiB scoped-VMEM default (and v7x's 64 MiB
    # physical VMEM) while each DMA stays large enough to sit near the HBM
    # roofline.
    tc = C if C <= 256 else 256            # full extent or multiple of 8
    thw = HW if HW <= 2048 else 2048       # full extent or multiple of 128

    grid = (B, pl.cdiv(C, tc), pl.cdiv(HW, thw))

    itemsize = jnp.dtype(x.dtype).itemsize
    cost = pl.CostEstimate(
        flops=B * C * HW,
        transcendentals=0,
        bytes_accessed=2 * B * C * HW * itemsize + C * itemsize,
    )

    out = pl.pallas_call(
        _implicit_m_kernel,
        out_shape=jax.ShapeDtypeStruct((B, C, HW), x.dtype),
        grid=grid,
        in_specs=[
            # x: squeeze the batch dim; kernel sees a lane-dense (tc, thw) slab.
            pl.BlockSpec((None, tc, thw), lambda b, ci, hi: (b, ci, hi)),
            # per-channel scale: (tc, 1), re-used across batch / spatial tiles.
            pl.BlockSpec((tc, 1), lambda b, ci, hi: (ci, 0)),
        ],
        out_specs=pl.BlockSpec((None, tc, thw), lambda b, ci, hi: (b, ci, hi)),
        compiler_params=pltpu.CompilerParams(
            dimension_semantics=("parallel", "parallel", "parallel")),
        cost_estimate=cost,
    )(x, scale)

    return out.reshape(B, C, H, W)


def _reference(x_nchw, implicit):
    return implicit * x_nchw


if __name__ == "__main__":
    key = jax.random.PRNGKey(0)
    B, C, H, W = 2, 64, 16, 16

    kx, kw = jax.random.split(key, 2)
    x = jax.random.normal(kx, (B, C, H, W), dtype=jnp.float32)
    # nn.Parameter(torch.ones(1, C, 1, 1)) then nn.init.normal_(mean=0, std=0.02)
    # -> the parameter is simply ~ N(0, 0.02**2).
    implicit = 0.0 + 0.02 * jax.random.normal(kw, (1, C, 1, 1), dtype=jnp.float32)

    y = implicit_m(x, implicit)
    y = jax.block_until_ready(y)

    y_ref = _reference(x, implicit)
    assert y.shape == (B, C, H, W)
    assert jnp.allclose(y, y_ref, atol=1e-6, rtol=1e-6), "mismatch vs reference"

    print("KERNEL_OK")
</pallas_src>

<mosaic_0001>
module attributes {stable_mosaic.version = 11 : i64} {
  func.func @_implicit_m_kernel(%arg0: i32, %arg1: i32, %arg2: i32, %arg3: memref<1x64x256xf32, #tpu.memory_space<vmem>>, %arg4: memref<64x1xf32, #tpu.memory_space<vmem>>, %arg5: memref<1x64x256xf32, #tpu.memory_space<vmem>>) attributes {dimension_semantics = [#tpu.dimension_semantics<parallel>, #tpu.dimension_semantics<parallel>, #tpu.dimension_semantics<parallel>], iteration_bounds = array<i64: 2, 1, 1>, scalar_prefetch = 0 : i64, scratch_operands = 0 : i64, tpu.core_type = #tpu.core_type<tc>, window_params = [{transform_indices = @transform_0, window_bounds = array<i64: 1, 64, 256>}, {transform_indices = @transform_1, window_bounds = array<i64: 64, 1>}, {transform_indices = @transform_2, window_bounds = array<i64: 1, 64, 256>}]} {
    %c0 = arith.constant 0 : index
    %c0_0 = arith.constant 0 : index
    %c0_1 = arith.constant 0 : index
    %0 = vector.load %arg3[%c0, %c0_0, %c0_1] : memref<1x64x256xf32, #tpu.memory_space<vmem>>, vector<1x64x256xf32>
    %1 = vector.shape_cast %0 : vector<1x64x256xf32> to vector<64x256xf32>
    %c0_2 = arith.constant 0 : index
    %c0_3 = arith.constant 0 : index
    %2 = vector.load %arg4[%c0_2, %c0_3] : memref<64x1xf32, #tpu.memory_space<vmem>>, vector<64x1xf32>
    %3 = vector.broadcast %2 : vector<64x1xf32> to vector<64x256xf32>
    %4 = arith.mulf %1, %3 : vector<64x256xf32>
    %c0_4 = arith.constant 0 : index
    %c0_5 = arith.constant 0 : index
    %c0_6 = arith.constant 0 : index
    %5 = vector.load %arg5[%c0_4, %c0_5, %c0_6] : memref<1x64x256xf32, #tpu.memory_space<vmem>>, vector<1x64x256xf32>
    %6 = vector.shape_cast %5 : vector<1x64x256xf32> to vector<64x256xf32>
    %7 = vector.shape_cast %4 : vector<64x256xf32> to vector<1x64x256xf32>
    tpu.vector_store %arg5[%c0_4, %c0_5, %c0_6], %7 {strides = array<i32>} : memref<1x64x256xf32, #tpu.memory_space<vmem>>, vector<1x64x256xf32>,
    return
  }
  func.func @transform_0(%arg0: i32, %arg1: i32, %arg2: i32) -> (i32, i32, i32) {
    %c0_i32 = arith.constant 0 : i32
    return %arg0, %arg1, %arg2 : i32, i32, i32
  }
  func.func @transform_1(%arg0: i32, %arg1: i32, %arg2: i32) -> (i32, i32) {
    %c0_i32 = arith.constant 0 : i32
    %c0_i32_0 = arith.constant 0 : i32
    return %arg1, %c0_i32 : i32, i32
  }
  func.func @transform_2(%arg0: i32, %arg1: i32, %arg2: i32) -> (i32, i32, i32) {
    %c0_i32 = arith.constant 0 : i32
    return %arg0, %arg1, %arg2 : i32, i32, i32
  }
}

</mosaic_0001>

<llo_original>
// kernel: tpu_custom_call.1
$region0: #{tpu_custom_call.1}
  #allocation0 [shape = 'u32[]', space=smem, size = 0x4, offset = 0x4, fixed_abs, tag = 'smem constant byte address 0x4 - core index']
  #allocation1 [shape = 'u32[144,128]{1,0:T(1,128)}', space=vmem, size = 0x12000, scoped, tag = 'internal scratch']
  %s0 = inlined_call_operand.hbm [shape: f32[2,64,256], index: 0, kind: input, shape index: {}]
  %s1 = inlined_call_operand.vmem [shape: f32[64,1], index: 1, kind: input, shape index: {}]
  %s2 = inlined_call_operand.hbm [shape: f32[2,64,256], index: 2, kind: output, shape index: {}]
  %s3 = sld [smem:[#allocation0]]
  $region45: #{tpu_custom_call.1} parent=0
    _
  %s5 = ssub.s32 1, %s3
  %s6 = scalar_select 0, %s5, %s3
  $region1: #{tpu_custom_call.1} parent=0
    #allocation2 [shape = 'u8[131072]{0}', space=vmem, size = 0x20000, scoped, tag = 'input window, operand 0']
    #allocation3 [shape = 's32[2]{0}', space=sflag, size = 0x8, scoped, tag = 'scoped memory for tpu_custom_call.1']
    #allocation4 [shape = 's32[2]{0}', space=sflag, size = 0x8, scoped, tag = 'scoped memory for tpu_custom_call.1']
    #allocation5 [shape = 'u8[131072]{0}', space=vmem, size = 0x20000, scoped, tag = 'output window, operand 0']
    %7 = vsyncpa [#allocation3], 0
    %s8 = scalar_lea.sflag [#allocation3], 1
    %9 = vsyncpa %s8, 0
    %10 = vsyncpa [#allocation4], 0
    %s11 = scalar_lea.sflag [#allocation4], 1
    %12 = vsyncpa %s11, 0
    loop: start=0, step=1, limit=4
    $region2: #{tpu_custom_call.1} parent=1 // loop_pre_header
      _
    $region3: #{tpu_custom_call.1} parent=1 // loop_header
      %s14 = sphi 0, %s18
      %p15 = scmp.ge.s32.totalorder %s14, 4
      %s21 = sphi 0, %s40
      %s22 = sphi 0, %s36
      %s23 = sphi 0, %s32
      %s24 = sphi 0, %s21
      %s25 = sphi 0, %s22
      %s26 = sphi 0, %s23
      %s27 = sphi 0, %s24
      %s28 = sphi 0, %s25
      %s29 = sphi 0, %s26
      %s47 = sphi 0, %s49
      %s50 = sphi 0, %s47
      %s51 = sphi 0, %s50
      %s67 = sphi 0, %s51
      %s73 = sphi 0, %s75
      %s76 = sphi 0, %s73
      %s77 = sphi 0, %s76
      %s93 = sphi 0, %s77
      %s103 = sphi 0, %s105
      %s106 = sphi 0, %s103
      %s107 = sphi 0, %s106
      %s123 = sphi 0, %s107
    $region4: #{tpu_custom_call.1} parent=1 // loop_header_branch
      %17 = sbr.rel (%p15) target = $region8
    $region5: #{tpu_custom_call.1} parent=1 // loop_body
      %s19 = ssub.s32 %s14, 1
      %s20 = ssub.s32 %s14, 2
      %s30 = sadd.s32 1, %s23
      %p31 = scmp.ge.s32.totalorder %s30, 1
      %s32 = scalar_select %p31, 0, %s30
      %s33 = sadd.s32 1, %s22
      %s34 = scalar_select %p31, %s33, %s22
      %p35 = scmp.ge.s32.totalorder %s34, 1
      %s36 = scalar_select %p35, 0, %s34
      %s37 = sadd.s32 1, %s21
      %s38 = scalar_select %p35, %s37, %s21
      %p39 = scmp.ge.s32.totalorder %s38, 2
      %s40 = scalar_select %p39, 0, %s38
      %s41 = ssub.s32 %s21, %s40
      %s42 = ssub.s32 %s22, %s36
      %s43 = sor.u32 %s41, %s42
      %s44 = ssub.s32 %s23, %s32
      %s45 = sor.u32 %s43, %s44
      %p46 = scmp.eq.s32.totalorder %s45, 0
      %s48 = sadd.s32 %s47, 1
      %s49 = scalar_select %p46, %s47, %s48
      %p52 = pneg %p46
      %p53 = scmp.eq.s32.totalorder %s14, 1
      %p54 = por %p52, %p53
      %p55 = scmp.ne.s32.totalorder %s47, %s50
      %p56 = scmp.eq.s32.totalorder %s14, 0
      %p57 = por %p55, %p56
      %p58 = scmp.ne.s32.totalorder %s47, %s50
      %p59 = scmp.eq.s32.totalorder %s19, 1
      %p60 = por %p58, %p59
      %p61 = scmp.ne.s32.totalorder %s50, %s51
      %p62 = scmp.eq.s32.totalorder %s19, 0
      %p63 = por %p61, %p62
      %p64 = scmp.ne.s32.totalorder %s50, %s51
      %p65 = scmp.eq.s32.totalorder %s20, 1
      %p66 = por %p64, %p65
      %p68 = scmp.ne.s32.totalorder %s51, %s67
      %p69 = scmp.eq.s32.totalorder %s20, 0
      %p70 = por %p68, %p69
      %s71 = ssub.s32 %s22, %s36
      %p72 = scmp.eq.s32.totalorder %s71, 0
      %s74 = sadd.s32 %s73, 1
      %s75 = scalar_select %p72, %s73, %s74
      %p78 = pneg %p72
      %p79 = scmp.eq.s32.totalorder %s14, 1
      %p80 = por %p78, %p79
      %p81 = scmp.ne.s32.totalorder %s73, %s76
      %p82 = scmp.eq.s32.totalorder %s14, 0
      %p83 = por %p81, %p82
      %p84 = scmp.ne.s32.totalorder %s73, %s76
      %p85 = scmp.eq.s32.totalorder %s19, 1
      %p86 = por %p84, %p85
      %p87 = scmp.ne.s32.totalorder %s76, %s77
      %p88 = scmp.eq.s32.totalorder %s19, 0
      %p89 = por %p87, %p88
      %p90 = scmp.ne.s32.totalorder %s76, %s77
      %p91 = scmp.eq.s32.totalorder %s20, 1
      %p92 = por %p90, %p91
      %p94 = scmp.ne.s32.totalorder %s77, %s93
      %p95 = scmp.eq.s32.totalorder %s20, 0
      %p96 = por %p94, %p95
      %s97 = ssub.s32 %s21, %s40
      %s98 = ssub.s32 %s22, %s36
      %s99 = sor.u32 %s97, %s98
      %s100 = ssub.s32 %s23, %s32
      %s101 = sor.u32 %s99, %s100
      %p102 = scmp.eq.s32.totalorder %s101, 0
      %s104 = sadd.s32 %s103, 1
      %s105 = scalar_select %p102, %s103, %s104
      %p108 = pneg %p102
      %p109 = scmp.eq.s32.totalorder %s14, 1
      %p110 = por %p108, %p109
      %p111 = scmp.ne.s32.totalorder %s103, %s106
      %p112 = scmp.eq.s32.totalorder %s14, 0
      %p113 = por %p111, %p112
      %p114 = scmp.ne.s32.totalorder %s103, %s106
      %p115 = scmp.eq.s32.totalorder %s19, 1
      %p116 = por %p114, %p115
      %p117 = scmp.ne.s32.totalorder %s106, %s107
      %p118 = scmp.eq.s32.totalorder %s19, 0
      %p119 = por %p117, %p118
      %p120 = scmp.ne.s32.totalorder %s106, %s107
      %p121 = scmp.eq.s32.totalorder %s20, 1
      %p122 = por %p120, %p121
      %p124 = scmp.ne.s32.totalorder %s107, %s123
      %p125 = scmp.eq.s32.totalorder %s20, 0
      %p126 = por %p124, %p125
      %p127 = scmp.le.s32.totalorder 1, %s14
      %p128 = scmp.lt.s32.totalorder %s14, 3
      %p129 = pnand %p127, %p128
      %p130 = pneg %p129
      // Predicated region
      $region9: #{tpu_custom_call.1} parent=5 // pred_check
        _
      $region10: #{tpu_custom_call.1} parent=5 // pred_check_branch
        %132 = sbr.rel (%p129) target = $region12
      $region11: #{tpu_custom_call.1} parent=5 // pred_region
        %s133 = ssub.s32 %s14, 1
        // Predicated region
        $region13: #{tpu_custom_call.1} parent=11 // pred_check
          %p134 = pneg %p89
        $region14: #{tpu_custom_call.1} parent=11 // pred_check_branch
          %136 = sbr.rel (%p134) target = $region16
        $region15: #{tpu_custom_call.1} parent=11 // pred_region
          %s137 = smul.u32 8, %s25
          %p138 = scmp.lt.s32.totalorder %s137, 7
          %s139 = scalar_select %p138, %s137, 7
          %s140 = smul.addr %s139, 8
          %s141 = scalar_lea.vmem %s1, %s140
          %s142 = smul.u32 8, %s25
        $region16: #{tpu_custom_call.1} parent=11 // pred_fallthru
          _
      $region12: #{tpu_custom_call.1} parent=5 // pred_fallthru
        _
      %p143 = scmp.lt.s32.totalorder %s14, 2
      // Predicated region
      $region17: #{tpu_custom_call.1} parent=5 // pred_check
        %p144 = pneg %p143
      $region18: #{tpu_custom_call.1} parent=5 // pred_check_branch
        %146 = sbr.rel (%p144) target = $region20
      $region19: #{tpu_custom_call.1} parent=5 // pred_region
        // Predicated region
        $region21: #{tpu_custom_call.1} parent=19 // pred_check
          %p147 = pneg %p57
        $region22: #{tpu_custom_call.1} parent=19 // pred_check_branch
          %149 = sbr.rel (%p147) target = $region24
        $region23: #{tpu_custom_call.1} parent=19 // pred_region
          %s150 = sand.u32 %s47, 1
          %s151 = scalar_lea.sflag [#allocation3], %s150
          %s152 = sand.u32 %s47, 1
          %s153 = smul.addr %s152, 128
          %s154 = scalar_lea.vmem [#allocation2], %s153
          %s155 = smul.u32 8, %s22
          %s156 = smul.u32 2, %s23
          %s158 = ssub.s32 2048, 2048
          %159 = vsyncadd %s151, %s158
          %s160 = smul.addr %s155, 2
          %s161 = sadd.s32 %s156, %s160
          %s162 = smul.addr %s21, 16
          %s163 = sadd.s32 %s161, %s162
          %s164 = smul.addr %s163, 128
          %s165 = scalar_lea.hbm %s0, %s164
          %s166 = sshll.u32 %s154, 4
          %s167 = int_to_ptr.vmem [resolvable:$true] %s166
          %172 = dma.hbm_to_vmem [thread:$0]  %s165, 2048, %s167, %s151, 256, 256, 16
        $region24: #{tpu_custom_call.1} parent=19 // pred_fallthru
          _
      $region20: #{tpu_custom_call.1} parent=5 // pred_fallthru
        _
      %p173 = scmp.le.s32.totalorder 1, %s14
      %p174 = scmp.lt.s32.totalorder %s14, 3
      %p175 = pnand %p173, %p174
      %p176 = pneg %p175
      // Predicated region
      $region25: #{tpu_custom_call.1} parent=5 // pred_check
        _
      $region26: #{tpu_custom_call.1} parent=5 // pred_check_branch
        %178 = sbr.rel (%p175) target = $region28
      $region27: #{tpu_custom_call.1} parent=5 // pred_region
        %s179 = ssub.s32 %s14, 1
        %s180 = sand.u32 %s50, 1
        %s181 = scalar_lea.sflag [#allocation3], %s180
        %s182 = sand.u32 %s50, 1
        %s183 = smul.addr %s182, 128
        %s184 = scalar_lea.vmem [#allocation2], %s183
        // Predicated region
        $region29: #{tpu_custom_call.1} parent=27 // pred_check
          %p185 = pneg %p63
        $region30: #{tpu_custom_call.1} parent=27 // pred_check_branch
          %187 = sbr.rel (%p185) target = $region32
        $region31: #{tpu_custom_call.1} parent=27 // pred_region
          %188 = dma.done %s181, 2048
        $region32: #{tpu_custom_call.1} parent=27 // pred_fallthru
          _
        %s189 = sand.u32 %s50, 1
        %s190 = scalar_lea.sflag [#allocation3], %s189
        %s191 = sand.u32 %s50, 1
        %s192 = smul.addr %s191, 128
        %s193 = scalar_lea.vmem [#allocation2], %s192
        %p194 = pneg %p63
        %p195 = pneg %p60
        %s196 = smul.u32 8, %s25
        %p197 = scmp.lt.s32.totalorder %s196, 7
        %s198 = scalar_select %p197, %s196, 7
        %s199 = smul.addr %s198, 8
        %s200 = scalar_lea.vmem %s1, %s199
        %p201 = pneg %p89
        %p202 = pneg %p86
        %p203 = pneg %p119
        %p204 = pneg %p116
        %s205 = sand.u32 %s106, 1
        %s206 = scalar_lea.sflag [#allocation4], %s205
        %s207 = sand.u32 %s106, 1
        %s208 = smul.addr %s207, 128
        %s209 = scalar_lea.vmem [#allocation5], %s208
        %s210 = smul.u32 8, %s25
        %s211 = smul.u32 2, %s26
        %s212 = smul.u32 8, %s25
        %p213 = scmp.lt.s32.totalorder %s212, 7
        %s214 = scalar_select %p213, %s212, 7
        %s215 = smul.addr %s214, 8
        %s216 = scalar_lea.vmem %s1, %s215
        %s217 = smul.u32 8, %s25
        %s218 = smul.u32 8, %s25
        %s219 = smul.u32 2, %s26
        %v220 = vld [vmem:[%s184] sm:$0xff]
        %v221 = vld [vmem:[%s184 + $0x8] sm:$0xff]
        %v222 = vld [vmem:[%s184 + $0x10] sm:$0xff]
        %v223 = vld [vmem:[%s184 + $0x18] sm:$0xff]
        %v224 = vld [vmem:[%s184 + $0x20] sm:$0xff]
        %v225 = vld [vmem:[%s184 + $0x28] sm:$0xff]
        %v226 = vld [vmem:[%s184 + $0x30] sm:$0xff]
        %v227 = vld [vmem:[%s184 + $0x38] sm:$0xff]
        %v228 = vld [vmem:[%s184 + $0x40] sm:$0xff]
        %v229 = vld [vmem:[%s184 + $0x48] sm:$0xff]
        %v230 = vld [vmem:[%s184 + $0x50] sm:$0xff]
        %v231 = vld [vmem:[%s184 + $0x58] sm:$0xff]
        %v232 = vld [vmem:[%s184 + $0x60] sm:$0xff]
        %v233 = vld [vmem:[%s184 + $0x68] sm:$0xff]
        %v234 = vld [vmem:[%s184 + $0x70] sm:$0xff]
        %v235 = vld [vmem:[%s184 + $0x78] sm:$0xff]
        %v236 = vld [vmem:[%s216] sm:$0xff]
        %v237 = vld [vmem:[%s216 + $0x8] sm:$0xff]
        %v238 = vld [vmem:[%s216 + $0x10] sm:$0xff]
        %v239 = vld [vmem:[%s216 + $0x18] sm:$0xff]
        %v240 = vld [vmem:[%s216 + $0x20] sm:$0xff]
        %v241 = vld [vmem:[%s216 + $0x28] sm:$0xff]
        %v242 = vld [vmem:[%s216 + $0x30] sm:$0xff]
        %v243 = vld [vmem:[%s216 + $0x38] sm:$0xff]
        %245 = vset.pattern.permute.xlu0 0
        %246 = vperm.xlu0 %245, %v236
        %v247 = vpop.permute.xlu0 %246
        %250 = vset.pattern.permute.xlu0 0
        %251 = vperm.xlu0 %250, %v237
        %v252 = vpop.permute.xlu0 %251
        %255 = vset.pattern.permute.xlu0 0
        %256 = vperm.xlu0 %255, %v238
        %v257 = vpop.permute.xlu0 %256
        %260 = vset.pattern.permute.xlu0 0
        %261 = vperm.xlu0 %260, %v239
        %v262 = vpop.permute.xlu0 %261
        %265 = vset.pattern.permute.xlu0 0
        %266 = vperm.xlu0 %265, %v240
        %v267 = vpop.permute.xlu0 %266
        %270 = vset.pattern.permute.xlu0 0
        %271 = vperm.xlu0 %270, %v241
        %v272 = vpop.permute.xlu0 %271
        %275 = vset.pattern.permute.xlu0 0
        %276 = vperm.xlu0 %275, %v242
        %v277 = vpop.permute.xlu0 %276
        %280 = vset.pattern.permute.xlu0 0
        %281 = vperm.xlu0 %280, %v243
        %v282 = vpop.permute.xlu0 %281
        %v284 = vmul.f32 %v220, %v247
        %v285 = vmul.f32 %v221, %v247
        %v286 = vmul.f32 %v222, %v252
        %v287 = vmul.f32 %v223, %v252
        %v288 = vmul.f32 %v224, %v257
        %v289 = vmul.f32 %v225, %v257
        %v290 = vmul.f32 %v226, %v262
        %v291 = vmul.f32 %v227, %v262
        %v292 = vmul.f32 %v228, %v267
        %v293 = vmul.f32 %v229, %v267
        %v294 = vmul.f32 %v230, %v272
        %v295 = vmul.f32 %v231, %v272
        %v296 = vmul.f32 %v232, %v277
        %v297 = vmul.f32 %v233, %v277
        %v298 = vmul.f32 %v234, %v282
        %v299 = vmul.f32 %v235, %v282
        %300 = vst [vmem:[%s209] sm:$0xff] %v284
        %301 = vst [vmem:[%s209 + $0x8] sm:$0xff] %v285
        %302 = vst [vmem:[%s209 + $0x10] sm:$0xff] %v286
        %303 = vst [vmem:[%s209 + $0x18] sm:$0xff] %v287
        %304 = vst [vmem:[%s209 + $0x20] sm:$0xff] %v288
        %305 = vst [vmem:[%s209 + $0x28] sm:$0xff] %v289
        %306 = vst [vmem:[%s209 + $0x30] sm:$0xff] %v290
        %307 = vst [vmem:[%s209 + $0x38] sm:$0xff] %v291
        %308 = vst [vmem:[%s209 + $0x40] sm:$0xff] %v292
        %309 = vst [vmem:[%s209 + $0x48] sm:$0xff] %v293
        %310 = vst [vmem:[%s209 + $0x50] sm:$0xff] %v294
        %311 = vst [vmem:[%s209 + $0x58] sm:$0xff] %v295
        %312 = vst [vmem:[%s209 + $0x60] sm:$0xff] %v296
        %313 = vst [vmem:[%s209 + $0x68] sm:$0xff] %v297
        %314 = vst [vmem:[%s209 + $0x70] sm:$0xff] %v298
        %315 = vst [vmem:[%s209 + $0x78] sm:$0xff] %v299
        %s316 = sand.u32 %s106, 1
        %s317 = scalar_lea.sflag [#allocation4], %s316
        %s318 = sand.u32 %s106, 1
        %s319 = smul.addr %s318, 128
        %s320 = scalar_lea.vmem [#allocation5], %s319
        // Predicated region
        $region33: #{tpu_custom_call.1} parent=27 // pred_check
          %p321 = pneg %p116
        $region34: #{tpu_custom_call.1} parent=27 // pred_check_branch
          %323 = sbr.rel (%p321) target = $region36
        $region35: #{tpu_custom_call.1} parent=27 // pred_region
          %s324 = smul.u32 8, %s25
          %s325 = smul.u32 2, %s26
          %s327 = ssub.s32 2048, 2048
          %328 = vsyncadd %s317, %s327
          %s329 = smul.addr %s324, 2
          %s330 = sadd.s32 %s325, %s329
          %s331 = smul.addr %s24, 16
          %s332 = sadd.s32 %s330, %s331
          %s333 = smul.addr %s332, 128
          %s334 = scalar_lea.hbm %s2, %s333
          %s335 = sshll.u32 %s320, 4
          %s336 = int_to_ptr.vmem [resolvable:$true] %s335
          %341 = dma.vmem_to_hbm [thread:$0]  %s336, 2048, %s334, %s317, 256, 256, 16
        $region36: #{tpu_custom_call.1} parent=27 // pred_fallthru
          _
      $region28: #{tpu_custom_call.1} parent=5 // pred_fallthru
        _
      %p342 = scmp.le.s32.totalorder 2, %s14
      // Predicated region
      $region37: #{tpu_custom_call.1} parent=5 // pred_check
        %p343 = pneg %p342
      $region38: #{tpu_custom_call.1} parent=5 // pred_check_branch
        %345 = sbr.rel (%p343) target = $region40
      $region39: #{tpu_custom_call.1} parent=5 // pred_region
        %s346 = ssub.s32 %s14, 2
        // Predicated region
        $region41: #{tpu_custom_call.1} parent=39 // pred_check
          %p347 = pneg %p122
        $region42: #{tpu_custom_call.1} parent=39 // pred_check_branch
          %349 = sbr.rel (%p347) target = $region44
        $region43: #{tpu_custom_call.1} parent=39 // pred_region
          %s350 = sand.u32 %s107, 1
          %s351 = scalar_lea.sflag [#allocation4], %s350
          %s352 = sand.u32 %s107, 1
          %s353 = smul.addr %s352, 128
          %s354 = scalar_lea.vmem [#allocation5], %s353
          %355 = dma.done %s351, 2048
        $region44: #{tpu_custom_call.1} parent=39 // pred_fallthru
          _
      $region40: #{tpu_custom_call.1} parent=5 // pred_fallthru
        _
    $region6: #{tpu_custom_call.1} parent=1 // loop_footer
      %s18 = sadd.s32 1, %s14
    $region7: #{tpu_custom_call.1} parent=1 // loop_footer_branch
      %13 = sbr.rel target = $region3
    $region8: #{tpu_custom_call.1} parent=1 // loop_exit
      _
    %356 = vsyncpa [#allocation3], 1
    %s357 = scalar_lea.sflag [#allocation3], 1
    %358 = vsyncpa %s357, 1
    %359 = vsyncpa [#allocation4], 1
    %s360 = scalar_lea.sflag [#allocation4], 1
    %361 = vsyncpa %s360, 1

</llo_original>
